<compile_context>
chip_gen: v6e
topology: v6e:2x2x1
jax: 0.10.0
libtpu: 0.0.40
codegen_flags: <defaults>
</compile_context>

<pallas_src>
import jax
import jax.numpy as jnp
from jax.experimental import pallas as pl
from jax.experimental.pallas import tpu as pltpu

Nt = 100
T = 1.0
dt = T / Nt

HIDDEN_DIM = 64
MAX_TILE_N = 1024   # max batch points (lanes) per grid step
SUB_CHUNK = 256     # lanes per in-kernel sub-chunk (16 vregs of f32 activation)


def _choose_tile(n):
    """Pick a lane-tile size: multiple of 128, grid >= 2 when possible, <= 1024."""
    n128 = ((n + 127) // 128) * 128
    for tile in (MAX_TILE_N, 512, 256, 128):
        if n128 >= 2 * tile:
            return tile
    return 128


def _make_kernel(tile_n, chunk):
    n_chunks = tile_n // chunk
    inv_nt = float(1.0 / Nt)

    def kernel(xt_ref, pk_ref, w2_ref, w3_ref, o_ref):
        # xt_ref : (2, tile_n)  stacked [x; t_step] rows (points on lanes)
        # pk_ref : (H, 8)       packed [w1_x, w1_t, b1, b2, b3, w4, b4, 0]
        # w2_ref, w3_ref : (H, H) transposed hidden weights
        # o_ref  : (1, tile_n)  lane-dense output row
        w1x = pk_ref[:, 0:1]          # (H, 1)
        w1t = pk_ref[:, 1:2]
        b1c = pk_ref[:, 2:3]
        b2c = pk_ref[:, 3:4]
        b3c = pk_ref[:, 4:5]
        w4c = pk_ref[:, 5:6]
        b4c = pk_ref[0:1, 6:7]        # (1, 1) scalar bias (replicated column)
        w2 = w2_ref[...]
        w3 = w3_ref[...]

        # Independent lane chunks: keeps vreg pressure low and lets the LLO
        # scheduler overlap EUP (tanh) of one chunk with MXU of the next.
        for c in range(n_chunks):     # static unrolled loop, static slices
            start = c * chunk
            xt = xt_ref[:, pl.ds(start, chunk)]            # (2, chunk)
            x = xt[0:1, :]
            t_norm = xt[1:2, :] * jnp.float32(inv_nt)

            # Layer 1 (in=2) on the VPU: a K=2 matmul wastes an MXU pass.
            h = jnp.tanh(w1x * x + w1t * t_norm + b1c)     # (H, chunk)

            # Layers 2 & 3 on the MXU: (H,H) @ (H,chunk), f32 accumulate.
            h = jnp.tanh(
                jnp.dot(w2, h, preferred_element_type=jnp.float32) + b2c)
            h = jnp.tanh(
                jnp.dot(w3, h, preferred_element_type=jnp.float32) + b3c)

            # Layer 4 (out=1) on the VPU: multiply + sublane reduce gives the
            # lane-dense (1, chunk) output directly.
            out = jnp.sum(w4c * h, axis=0, keepdims=True) + b4c
            o_ref[:, pl.ds(start, chunk)] = out.astype(o_ref.dtype)

    return kernel


def burgers_net_pallas(x_flat, t_flat, params):
    """x_flat, t_flat: (N,) float32. Returns (N, 1) float32."""
    w1, b1, w2, b2, w3, b3, w4, b4 = params
    n = x_flat.shape[0]
    h = w1.shape[1]

    tile_n = _choose_tile(n)
    chunk = min(tile_n, SUB_CHUNK)
    n_pad = ((n + tile_n - 1) // tile_n) * tile_n
    pad = n_pad - n
    grid = (n_pad // tile_n,)

    # Single stacked (2, n_pad) input: one DMA per grid step instead of two.
    xt = jnp.stack([x_flat.astype(jnp.float32), t_flat.astype(jnp.float32)],
                   axis=0)
    xt = jnp.pad(xt, ((0, 0), (0, pad)))

    # Pack all per-unit small params into one resident (H, 8) block:
    # columns = [w1_x, w1_t, b1, b2, b3, w4, b4(bcast), 0]
    packed = jnp.concatenate([
        w1[0].reshape(h, 1), w1[1].reshape(h, 1),
        b1.reshape(h, 1), b2.reshape(h, 1), b3.reshape(h, 1),
        w4.reshape(h, 1),
        jnp.broadcast_to(b4.reshape(1, 1), (h, 1)),
        jnp.zeros((h, 1), jnp.float32),
    ], axis=1).astype(jnp.float32)

    w2t = w2.T          # (H, H): hidden units on sublanes, contraction inner
    w3t = w3.T

    const = lambda i: (0, 0)   # resident weight blocks, never re-fetched
    flops = 2 * 2 * h * h * n_pad + 4 * h * n_pad + 2 * h * n_pad
    transcendentals = 3 * h * n_pad
    bytes_accessed = 4 * (3 * n_pad + 2 * h * h + 8 * h)

    out = pl.pallas_call(
        _make_kernel(tile_n, chunk),
        out_shape=jax.ShapeDtypeStruct((1, n_pad), jnp.float32),
        grid=grid,
        in_specs=[
            pl.BlockSpec((2, tile_n), lambda i: (0, i)),   # stacked x/t rows
            pl.BlockSpec((h, 8), const),                   # packed small params
            pl.BlockSpec((h, h), const),                   # W2^T
            pl.BlockSpec((h, h), const),                   # W3^T
        ],
        out_specs=pl.BlockSpec((1, tile_n), lambda i: (0, i)),  # lane-dense row
        compiler_params=pltpu.CompilerParams(
            dimension_semantics=("parallel",)),
        cost_estimate=pl.CostEstimate(
            flops=flops, transcendentals=transcendentals,
            bytes_accessed=bytes_accessed),
    )(xt, packed, w2t, w3t)

    return out[0, :n].reshape(n, 1)


def burgers_forward(x, t_step, params):
    """Mirrors BurgersContinuousNet.forward (t_norm = t/Nt computed in-kernel)."""
    x_flat = x.reshape(-1).astype(jnp.float32)
    t_flat = t_step.reshape(-1).astype(jnp.float32)
    return burgers_net_pallas(x_flat, t_flat, params)


def init_params(key, hidden_dim=HIDDEN_DIM):
    """Deterministic init mimicking nn.Linear (uniform +/- 1/sqrt(fan_in))."""
    dims = [(2, hidden_dim), (hidden_dim, hidden_dim),
            (hidden_dim, hidden_dim), (hidden_dim, 1)]
    params = []
    for (fan_in, fan_out) in dims:
        key, kw, kb = jax.random.split(key, 3)
        bound = 1.0 / jnp.sqrt(float(fan_in))
        w = jax.random.uniform(kw, (fan_in, fan_out), jnp.float32,
                               -bound, bound)
        b = jax.random.uniform(kb, (1, fan_out), jnp.float32, -bound, bound)
        params += [w, b]
    return tuple(params)


def _reference(x, t_step, params):
    w1, b1, w2, b2, w3, b3, w4, b4 = params
    hp = jax.lax.Precision.HIGHEST
    t_norm = (t_step.astype(jnp.float32) / Nt).reshape(-1, 1)
    x2 = x.reshape(-1, 1).astype(jnp.float32)
    inp = jnp.concatenate([x2, t_norm], axis=-1)
    h = jnp.tanh(jnp.dot(inp, w1, precision=hp) + b1)
    h = jnp.tanh(jnp.dot(h, w2, precision=hp) + b2)
    h = jnp.tanh(jnp.dot(h, w3, precision=hp) + b3)
    return jnp.dot(h, w4, precision=hp) + b4


if __name__ == "__main__":
    key = jax.random.PRNGKey(0)
    kp, kx, kt = jax.random.split(key, 3)

    params = init_params(kp)

    # Small example: 200 collocation points (spatial coord x, integer t_step).
    N = 200
    x = jax.random.uniform(kx, (N,), jnp.float32, -1.0, 1.0)
    t_step = jax.random.randint(kt, (N,), 0, Nt).astype(jnp.int32)

    fwd = jax.jit(burgers_forward)
    out = fwd(x, t_step, params)
    out = jax.block_until_ready(out)

    ref = _reference(x, t_step, params)
    assert out.shape == (N, 1)
    assert jnp.allclose(out, ref, atol=5e-5, rtol=5e-5)

    print("KERNEL_OK")
</pallas_src>

<mosaic_0001>
module attributes {stable_mosaic.version = 11 : i64} {
  func.func @kernel(%arg0: i32, %arg1: memref<2x128xf32, #tpu.memory_space<vmem>>, %arg2: memref<64x8xf32, #tpu.memory_space<vmem>>, %arg3: memref<64x64xf32, #tpu.memory_space<vmem>>, %arg4: memref<64x64xf32, #tpu.memory_space<vmem>>, %arg5: memref<1x128xf32, #tpu.memory_space<vmem>>) attributes {dimension_semantics = [#tpu.dimension_semantics<parallel>], iteration_bounds = array<i64: 2>, scalar_prefetch = 0 : i64, scratch_operands = 0 : i64, tpu.core_type = #tpu.core_type<tc>, window_params = [{transform_indices = @transform_0, window_bounds = array<i64: 2, 128>}, {pipeline_mode = #tpu.pipeline_mode<synchronous>, transform_indices = @transform_1, window_bounds = array<i64: 64, 8>}, {pipeline_mode = #tpu.pipeline_mode<synchronous>, transform_indices = @transform_2, window_bounds = array<i64: 64, 64>}, {pipeline_mode = #tpu.pipeline_mode<synchronous>, transform_indices = @transform_3, window_bounds = array<i64: 64, 64>}, {transform_indices = @transform_4, window_bounds = array<i64: 1, 128>}]} {
    %c0 = arith.constant 0 : index
    %c0_0 = arith.constant 0 : index
    %0 = vector.load %arg2[%c0, %c0_0] : memref<64x8xf32, #tpu.memory_space<vmem>>, vector<64x1xf32>
    %c0_1 = arith.constant 0 : index
    %c1 = arith.constant 1 : index
    %1 = vector.load %arg2[%c0_1, %c1] : memref<64x8xf32, #tpu.memory_space<vmem>>, vector<64x1xf32>
    %c0_2 = arith.constant 0 : index
    %c2 = arith.constant 2 : index
    %2 = vector.load %arg2[%c0_2, %c2] : memref<64x8xf32, #tpu.memory_space<vmem>>, vector<64x1xf32>
    %c0_3 = arith.constant 0 : index
    %c3 = arith.constant 3 : index
    %3 = vector.load %arg2[%c0_3, %c3] : memref<64x8xf32, #tpu.memory_space<vmem>>, vector<64x1xf32>
    %c0_4 = arith.constant 0 : index
    %c4 = arith.constant 4 : index
    %4 = vector.load %arg2[%c0_4, %c4] : memref<64x8xf32, #tpu.memory_space<vmem>>, vector<64x1xf32>
    %c0_5 = arith.constant 0 : index
    %c5 = arith.constant 5 : index
    %5 = vector.load %arg2[%c0_5, %c5] : memref<64x8xf32, #tpu.memory_space<vmem>>, vector<64x1xf32>
    %c0_6 = arith.constant 0 : index
    %c6 = arith.constant 6 : index
    %6 = vector.load %arg2[%c0_6, %c6] : memref<64x8xf32, #tpu.memory_space<vmem>>, vector<1x1xf32>
    %c0_7 = arith.constant 0 : index
    %c0_8 = arith.constant 0 : index
    %7 = vector.load %arg3[%c0_7, %c0_8] : memref<64x64xf32, #tpu.memory_space<vmem>>, vector<64x64xf32>
    %c0_9 = arith.constant 0 : index
    %c0_10 = arith.constant 0 : index
    %8 = vector.load %arg4[%c0_9, %c0_10] : memref<64x64xf32, #tpu.memory_space<vmem>>, vector<64x64xf32>
    %c0_11 = arith.constant 0 : index
    %c0_12 = arith.constant 0 : index
    %9 = vector.load %arg1[%c0_11, %c0_12] : memref<2x128xf32, #tpu.memory_space<vmem>>, vector<2x128xf32>
    %10 = vector.extract_strided_slice %9 {offsets = [0, 0], sizes = [1, 128], strides = [1, 1]} : vector<2x128xf32> to vector<1x128xf32>
    %11 = vector.extract_strided_slice %9 {offsets = [1, 0], sizes = [1, 128], strides = [1, 1]} : vector<2x128xf32> to vector<1x128xf32>
    %cst = arith.constant 0.00999999977 : f32
    %12 = vector.broadcast %cst : f32 to vector<1x128xf32>
    %13 = arith.mulf %11, %12 : vector<1x128xf32>
    %14 = vector.broadcast %0 : vector<64x1xf32> to vector<64x128xf32>
    %15 = vector.broadcast %10 : vector<1x128xf32> to vector<64x128xf32>
    %16 = arith.mulf %14, %15 : vector<64x128xf32>
    %17 = vector.broadcast %1 : vector<64x1xf32> to vector<64x128xf32>
    %18 = vector.broadcast %13 : vector<1x128xf32> to vector<64x128xf32>
    %19 = arith.mulf %17, %18 : vector<64x128xf32>
    %20 = arith.addf %16, %19 : vector<64x128xf32>
    %21 = vector.broadcast %2 : vector<64x1xf32> to vector<64x128xf32>
    %22 = arith.addf %20, %21 : vector<64x128xf32>
    %23 = math.tanh %22 : vector<64x128xf32>
    %cst_13 = arith.constant dense<0.000000e+00> : vector<64x128xf32>
    %24 = tpu.matmul %7, %23, %cst_13 {dimension_numbers = #tpu.dot_dimension_numbers<[1], [0], [0], [1], [0, 0, 1, 1], [], []>} : vector<64x64xf32>, vector<64x128xf32>, vector<64x128xf32> -> vector<64x128xf32>
    %25 = vector.broadcast %3 : vector<64x1xf32> to vector<64x128xf32>
    %26 = arith.addf %24, %25 : vector<64x128xf32>
    %27 = math.tanh %26 : vector<64x128xf32>
    %cst_14 = arith.constant dense<0.000000e+00> : vector<64x128xf32>
    %28 = tpu.matmul %8, %27, %cst_14 {dimension_numbers = #tpu.dot_dimension_numbers<[1], [0], [0], [1], [0, 0, 1, 1], [], []>} : vector<64x64xf32>, vector<64x128xf32>, vector<64x128xf32> -> vector<64x128xf32>
    %29 = vector.broadcast %4 : vector<64x1xf32> to vector<64x128xf32>
    %30 = arith.addf %28, %29 : vector<64x128xf32>
    %31 = math.tanh %30 : vector<64x128xf32>
    %32 = vector.broadcast %5 : vector<64x1xf32> to vector<64x128xf32>
    %33 = arith.mulf %32, %31 : vector<64x128xf32>
    %cst_15 = arith.constant dense<0.000000e+00> : vector<128xf32>
    %34 = vector.multi_reduction <add>, %33, %cst_15 [0] : vector<64x128xf32> to vector<128xf32>
    %35 = vector.shape_cast %34 : vector<128xf32> to vector<1x128xf32>
    %36 = vector.broadcast %6 : vector<1x1xf32> to vector<1x128xf32>
    %37 = arith.addf %35, %36 : vector<1x128xf32>
    %c0_16 = arith.constant 0 : index
    %c0_17 = arith.constant 0 : index
    %38 = vector.load %arg5[%c0_16, %c0_17] : memref<1x128xf32, #tpu.memory_space<vmem>>, vector<1x128xf32>
    tpu.vector_store %arg5[%c0_16, %c0_17], %37 {strides = array<i32>} : memref<1x128xf32, #tpu.memory_space<vmem>>, vector<1x128xf32>,
    return
  }
  func.func @transform_0(%arg0: i32) -> (i32, i32) {
    %c0_i32 = arith.constant 0 : i32
    %c0_i32_0 = arith.constant 0 : i32
    return %c0_i32, %arg0 : i32, i32
  }
  func.func @transform_1(%arg0: i32) -> (i32, i32) {
    %c0_i32 = arith.constant 0 : i32
    %c0_i32_0 = arith.constant 0 : i32
    %c0_i32_1 = arith.constant 0 : i32
    return %c0_i32, %c0_i32_0 : i32, i32
  }
  func.func @transform_2(%arg0: i32) -> (i32, i32) {
    %c0_i32 = arith.constant 0 : i32
    %c0_i32_0 = arith.constant 0 : i32
    %c0_i32_1 = arith.constant 0 : i32
    return %c0_i32, %c0_i32_0 : i32, i32
  }
  func.func @transform_3(%arg0: i32) -> (i32, i32) {
    %c0_i32 = arith.constant 0 : i32
    %c0_i32_0 = arith.constant 0 : i32
    %c0_i32_1 = arith.constant 0 : i32
    return %c0_i32, %c0_i32_0 : i32, i32
  }
  func.func @transform_4(%arg0: i32) -> (i32, i32) {
    %c0_i32 = arith.constant 0 : i32
    %c0_i32_0 = arith.constant 0 : i32
    return %c0_i32, %arg0 : i32, i32
  }
}

</mosaic_0001>

<llo_original>
// kernel: burgers_forward.1
$region0: #{burgers_forward.1}
  #allocation0 [shape = 'u32[]', space=smem, size = 0x4, offset = 0x4, fixed_abs, tag = 'smem constant byte address 0x4 - core index']
  #allocation1 [shape = 'u32[144,128]{1,0:T(1,128)}', space=vmem, size = 0x12000, scoped, tag = 'internal scratch']
  %s0 = inlined_call_operand.vmem [shape: f32[2,256], index: 0, kind: input, shape index: {}]
  %s1 = inlined_call_operand.vmem [shape: f32[64,8], index: 1, kind: input, shape index: {}]
  %s2 = inlined_call_operand.vmem [shape: f32[64,64], index: 2, kind: input, shape index: {}]
  %s3 = inlined_call_operand.vmem [shape: f32[64,64], index: 3, kind: input, shape index: {}]
  %s4 = inlined_call_operand.vmem [shape: f32[1,256], index: 4, kind: output, shape index: {}]
  %s5 = sld [smem:[#allocation0]]
  $region49: #{burgers_forward.1} parent=0
    _
  %s7 = ssub.s32 1, %s5
  %s8 = scalar_select 0, %s7, %s5
  loop: start=0, step=1, limit=4
  $region2: #{burgers_forward.1} parent=0 // loop_pre_header
    _
  $region3: #{burgers_forward.1} parent=0 // loop_header
    %s10 = sphi 0, %s14
    %p11 = scmp.ge.s32.totalorder %s10, 4
    %s20 = sphi 0, %s22
    %s23 = sphi 0, %s20
    %s24 = sphi 0, %s23
    %s40 = sphi 0, %s24
    %s44 = sphi 0, %s44
    %s46 = sphi 0, %s44
    %s47 = sphi 0, %s46
    %s61 = sphi 0, %s47
    %s65 = sphi 0, %s65
    %s67 = sphi 0, %s65
    %s68 = sphi 0, %s67
    %s82 = sphi 0, %s68
    %s86 = sphi 0, %s86
    %s88 = sphi 0, %s86
    %s89 = sphi 0, %s88
    %s103 = sphi 0, %s89
    %s109 = sphi 0, %s111
    %s112 = sphi 0, %s109
    %s113 = sphi 0, %s112
    %s129 = sphi 0, %s113
  $region4: #{burgers_forward.1} parent=0 // loop_header_branch
    %13 = sbr.rel (%p11) target = $region8
  $region5: #{burgers_forward.1} parent=0 // loop_body
    %s15 = ssub.s32 %s10, 1
    %s16 = ssub.s32 %s10, 2
    %s17 = sadd.s32 %s10, 1
    %s18 = ssub.s32 %s10, %s17
    %p19 = scmp.eq.s32.totalorder %s18, 0
    %s21 = sadd.s32 %s20, 1
    %s22 = scalar_select %p19, %s20, %s21
    %p25 = pneg %p19
    %p26 = scmp.eq.s32.totalorder %s10, 1
    %p27 = por %p25, %p26
    %p28 = scmp.ne.s32.totalorder %s20, %s23
    %p29 = scmp.eq.s32.totalorder %s10, 0
    %p30 = por %p28, %p29
    %p31 = scmp.ne.s32.totalorder %s20, %s23
    %p32 = scmp.eq.s32.totalorder %s15, 1
    %p33 = por %p31, %p32
    %p34 = scmp.ne.s32.totalorder %s23, %s24
    %p35 = scmp.eq.s32.totalorder %s15, 0
    %p36 = por %p34, %p35
    %p37 = scmp.ne.s32.totalorder %s23, %s24
    %p38 = scmp.eq.s32.totalorder %s16, 1
    %p39 = por %p37, %p38
    %p41 = scmp.ne.s32.totalorder %s24, %s40
    %p42 = scmp.eq.s32.totalorder %s16, 0
    %p43 = por %p41, %p42
    %s45 = sadd.s32 %s44, 1
    %p48 = scmp.eq.s32.totalorder %s10, 1
    %p49 = scmp.ne.s32.totalorder %s44, %s46
    %p50 = scmp.eq.s32.totalorder %s10, 0
    %p51 = por %p49, %p50
    %p52 = scmp.ne.s32.totalorder %s44, %s46
    %p53 = scmp.eq.s32.totalorder %s15, 1
    %p54 = por %p52, %p53
    %p55 = scmp.ne.s32.totalorder %s46, %s47
    %p56 = scmp.eq.s32.totalorder %s15, 0
    %p57 = por %p55, %p56
    %p58 = scmp.ne.s32.totalorder %s46, %s47
    %p59 = scmp.eq.s32.totalorder %s16, 1
    %p60 = por %p58, %p59
    %p62 = scmp.ne.s32.totalorder %s47, %s61
    %p63 = scmp.eq.s32.totalorder %s16, 0
    %p64 = por %p62, %p63
    %s66 = sadd.s32 %s65, 1
    %p69 = scmp.eq.s32.totalorder %s10, 1
    %p70 = scmp.ne.s32.totalorder %s65, %s67
    %p71 = scmp.eq.s32.totalorder %s10, 0
    %p72 = por %p70, %p71
    %p73 = scmp.ne.s32.totalorder %s65, %s67
    %p74 = scmp.eq.s32.totalorder %s15, 1
    %p75 = por %p73, %p74
    %p76 = scmp.ne.s32.totalorder %s67, %s68
    %p77 = scmp.eq.s32.totalorder %s15, 0
    %p78 = por %p76, %p77
    %p79 = scmp.ne.s32.totalorder %s67, %s68
    %p80 = scmp.eq.s32.totalorder %s16, 1
    %p81 = por %p79, %p80
    %p83 = scmp.ne.s32.totalorder %s68, %s82
    %p84 = scmp.eq.s32.totalorder %s16, 0
    %p85 = por %p83, %p84
    %s87 = sadd.s32 %s86, 1
    %p90 = scmp.eq.s32.totalorder %s10, 1
    %p91 = scmp.ne.s32.totalorder %s86, %s88
    %p92 = scmp.eq.s32.totalorder %s10, 0
    %p93 = por %p91, %p92
    %p94 = scmp.ne.s32.totalorder %s86, %s88
    %p95 = scmp.eq.s32.totalorder %s15, 1
    %p96 = por %p94, %p95
    %p97 = scmp.ne.s32.totalorder %s88, %s89
    %p98 = scmp.eq.s32.totalorder %s15, 0
    %p99 = por %p97, %p98
    %p100 = scmp.ne.s32.totalorder %s88, %s89
    %p101 = scmp.eq.s32.totalorder %s16, 1
    %p102 = por %p100, %p101
    %p104 = scmp.ne.s32.totalorder %s89, %s103
    %p105 = scmp.eq.s32.totalorder %s16, 0
    %p106 = por %p104, %p105
    %s107 = ssub.s32 %s10, %s17
    %p108 = scmp.eq.s32.totalorder %s107, 0
    %s110 = sadd.s32 %s109, 1
    %s111 = scalar_select %p108, %s109, %s110
    %p114 = pneg %p108
    %p115 = scmp.eq.s32.totalorder %s10, 1
    %p116 = por %p114, %p115
    %p117 = scmp.ne.s32.totalorder %s109, %s112
    %p118 = scmp.eq.s32.totalorder %s10, 0
    %p119 = por %p117, %p118
    %p120 = scmp.ne.s32.totalorder %s109, %s112
    %p121 = scmp.eq.s32.totalorder %s15, 1
    %p122 = por %p120, %p121
    %p123 = scmp.ne.s32.totalorder %s112, %s113
    %p124 = scmp.eq.s32.totalorder %s15, 0
    %p125 = por %p123, %p124
    %p126 = scmp.ne.s32.totalorder %s112, %s113
    %p127 = scmp.eq.s32.totalorder %s16, 1
    %p128 = por %p126, %p127
    %p130 = scmp.ne.s32.totalorder %s113, %s129
    %p131 = scmp.eq.s32.totalorder %s16, 0
    %p132 = por %p130, %p131
    %p133 = scmp.le.s32.totalorder 1, %s10
    %p134 = scmp.lt.s32.totalorder %s10, 3
    %p135 = pnand %p133, %p134
    %p136 = pneg %p135
    // Predicated region
    $region9: #{burgers_forward.1} parent=5 // pred_check
      _
    $region10: #{burgers_forward.1} parent=5 // pred_check_branch
      %138 = sbr.rel (%p135) target = $region12
    $region11: #{burgers_forward.1} parent=5 // pred_region
      %s139 = ssub.s32 %s10, 1
      // Predicated region
      $region13: #{burgers_forward.1} parent=11 // pred_check
        %p140 = pneg %p57
      $region14: #{burgers_forward.1} parent=11 // pred_check_branch
        %142 = sbr.rel (%p140) target = $region16
      $region15: #{burgers_forward.1} parent=11 // pred_region
        _
      $region16: #{burgers_forward.1} parent=11 // pred_fallthru
        _
      // Predicated region
      $region17: #{burgers_forward.1} parent=11 // pred_check
        %p143 = pneg %p78
      $region18: #{burgers_forward.1} parent=11 // pred_check_branch
        %145 = sbr.rel (%p143) target = $region20
      $region19: #{burgers_forward.1} parent=11 // pred_region
        _
      $region20: #{burgers_forward.1} parent=11 // pred_fallthru
        _
      // Predicated region
      $region21: #{burgers_forward.1} parent=11 // pred_check
        %p146 = pneg %p99
      $region22: #{burgers_forward.1} parent=11 // pred_check_branch
        %148 = sbr.rel (%p146) target = $region24
      $region23: #{burgers_forward.1} parent=11 // pred_region
        _
      $region24: #{burgers_forward.1} parent=11 // pred_fallthru
        _
    $region12: #{burgers_forward.1} parent=5 // pred_fallthru
      _
    %p149 = scmp.lt.s32.totalorder %s10, 2
    // Predicated region
    $region25: #{burgers_forward.1} parent=5 // pred_check
      %p150 = pneg %p149
    $region26: #{burgers_forward.1} parent=5 // pred_check_branch
      %152 = sbr.rel (%p150) target = $region28
    $region27: #{burgers_forward.1} parent=5 // pred_region
      // Predicated region
      $region29: #{burgers_forward.1} parent=27 // pred_check
        %p153 = pneg %p30
      $region30: #{burgers_forward.1} parent=27 // pred_check_branch
        %155 = sbr.rel (%p153) target = $region32
      $region31: #{burgers_forward.1} parent=27 // pred_region
        %p156 = scmp.lt.s32.totalorder %s10, 1
        %s157 = scalar_select %p156, %s10, 1
        %s158 = smul.addr %s157, 2
        %s159 = scalar_lea.vmem %s0, %s158
      $region32: #{burgers_forward.1} parent=27 // pred_fallthru
        _
    $region28: #{burgers_forward.1} parent=5 // pred_fallthru
      _
    %p160 = scmp.le.s32.totalorder 1, %s10
    %p161 = scmp.lt.s32.totalorder %s10, 3
    %p162 = pnand %p160, %p161
    %p163 = pneg %p162
    // Predicated region
    $region33: #{burgers_forward.1} parent=5 // pred_check
      _
    $region34: #{burgers_forward.1} parent=5 // pred_check_branch
      %165 = sbr.rel (%p162) target = $region36
    $region35: #{burgers_forward.1} parent=5 // pred_region
      %s166 = ssub.s32 %s10, 1
      %p167 = scmp.lt.s32.totalorder %s15, 1
      %s168 = scalar_select %p167, %s15, 1
      %s169 = smul.addr %s168, 2
      %s170 = scalar_lea.vmem %s0, %s169
      %p171 = pneg %p36
      %p172 = pneg %p33
      %p173 = pneg %p57
      %p174 = pneg %p54
      %p175 = pneg %p78
      %p176 = pneg %p75
      %p177 = pneg %p99
      %p178 = pneg %p96
      %p179 = pneg %p125
      %p180 = pneg %p122
      %p181 = scmp.lt.s32.totalorder %s15, 1
      %s182 = scalar_select %p181, %s15, 1
      %s183 = scalar_lea.vmem %s4, %s182
      %p184 = scmp.lt.s32.totalorder %s15, 1
      %s185 = scalar_select %p184, %s15, 1
      %s186 = smul.addr %s185, 2
      %s187 = scalar_lea.vmem %s0, %s186
      %p188 = scmp.lt.s32.totalorder %s15, 1
      %s189 = scalar_select %p188, %s15, 1
      %s190 = scalar_lea.vmem %s4, %s189
      %v191 = vld [vmem:[%s1] sm:$0xff]
      %v192 = vld [vmem:[%s1 + $0x8] sm:$0xff]
      %v193 = vld [vmem:[%s1 + $0x10] sm:$0xff]
      %v194 = vld [vmem:[%s1 + $0x18] sm:$0xff]
      %v195 = vld [vmem:[%s1 + $0x20] sm:$0xff]
      %v196 = vld [vmem:[%s1 + $0x28] sm:$0xff]
      %v197 = vld [vmem:[%s1 + $0x30] sm:$0xff]
      %v198 = vld [vmem:[%s1 + $0x38] sm:$0xff]
      %v199 = vld [vmem:[%s1] sm:$0x1]
      %v200 = vld [vmem:[%s2] sm:$0xff]
      %v201 = vld [vmem:[%s2 + $0x8] sm:$0xff]
      %v202 = vld [vmem:[%s2 + $0x10] sm:$0xff]
      %v203 = vld [vmem:[%s2 + $0x18] sm:$0xff]
      %v204 = vld [vmem:[%s2 + $0x20] sm:$0xff]
      %v205 = vld [vmem:[%s2 + $0x28] sm:$0xff]
      %v206 = vld [vmem:[%s2 + $0x30] sm:$0xff]
      %v207 = vld [vmem:[%s2 + $0x38] sm:$0xff]
      %v208 = vld [vmem:[%s3] sm:$0xff]
      %v209 = vld [vmem:[%s3 + $0x8] sm:$0xff]
      %v210 = vld [vmem:[%s3 + $0x10] sm:$0xff]
      %v211 = vld [vmem:[%s3 + $0x18] sm:$0xff]
      %v212 = vld [vmem:[%s3 + $0x20] sm:$0xff]
      %v213 = vld [vmem:[%s3 + $0x28] sm:$0xff]
      %v214 = vld [vmem:[%s3 + $0x30] sm:$0xff]
      %v215 = vld [vmem:[%s3 + $0x38] sm:$0xff]
      %v216 = vld [vmem:[%s187] sm:$0x3]
      %v217 = vmul.f32 %v216, 0.01
      %219 = vset.pattern.permute.xlu0 0
      %220 = vperm.xlu0 %219, %v191
      %v221 = vpop.permute.xlu0 %220
      %224 = vset.pattern.permute.xlu0 0
      %225 = vperm.xlu0 %224, %v192
      %v226 = vpop.permute.xlu0 %225
      %229 = vset.pattern.permute.xlu0 0
      %230 = vperm.xlu0 %229, %v193
      %v231 = vpop.permute.xlu0 %230
      %234 = vset.pattern.permute.xlu0 0
      %235 = vperm.xlu0 %234, %v194
      %v236 = vpop.permute.xlu0 %235
      %239 = vset.pattern.permute.xlu0 0
      %240 = vperm.xlu0 %239, %v195
      %v241 = vpop.permute.xlu0 %240
      %244 = vset.pattern.permute.xlu0 0
      %245 = vperm.xlu0 %244, %v196
      %v246 = vpop.permute.xlu0 %245
      %249 = vset.pattern.permute.xlu0 0
      %250 = vperm.xlu0 %249, %v197
      %v251 = vpop.permute.xlu0 %250
      %254 = vset.pattern.permute.xlu0 0
      %255 = vperm.xlu0 %254, %v198
      %v256 = vpop.permute.xlu0 %255
      %v258 = vlaneseq
      %v259 = vshrl.u32 %v258, 7
      %v260 = vsub.s32 0, %v259
      %v261 = vrot.slane %v216, %v260
      %v262 = vmul.f32 %v221, %v261
      %v263 = vmul.f32 %v226, %v261
      %v264 = vmul.f32 %v231, %v261
      %v265 = vmul.f32 %v236, %v261
      %v266 = vmul.f32 %v241, %v261
      %v267 = vmul.f32 %v246, %v261
      %v268 = vmul.f32 %v251, %v261
      %v269 = vmul.f32 %v256, %v261
      %270 = vset.pattern.permute.xlu0 1
      %271 = vperm.xlu0 %270, %v191
      %v272 = vpop.permute.xlu0 %271
      %274 = vset.pattern.permute.xlu0 1
      %275 = vperm.xlu0 %274, %v192
      %v276 = vpop.permute.xlu0 %275
      %278 = vset.pattern.permute.xlu0 1
      %279 = vperm.xlu0 %278, %v193
      %v280 = vpop.permute.xlu0 %279
      %282 = vset.pattern.permute.xlu0 1
      %283 = vperm.xlu0 %282, %v194
      %v284 = vpop.permute.xlu0 %283
      %286 = vset.pattern.permute.xlu0 1
      %287 = vperm.xlu0 %286, %v195
      %v288 = vpop.permute.xlu0 %287
      %290 = vset.pattern.permute.xlu0 1
      %291 = vperm.xlu0 %290, %v196
      %v292 = vpop.permute.xlu0 %291
      %294 = vset.pattern.permute.xlu0 1
      %295 = vperm.xlu0 %294, %v197
      %v296 = vpop.permute.xlu0 %295
      %298 = vset.pattern.permute.xlu0 1
      %299 = vperm.xlu0 %298, %v198
      %v300 = vpop.permute.xlu0 %299
      %v302 = vlaneseq
      %v303 = vshrl.u32 %v302, 7
      %v304 = vsub.s32 1, %v303
      %v305 = vrot.slane %v217, %v304
      %v306 = vmul.f32 %v272, %v305
      %v307 = vmul.f32 %v276, %v305
      %v308 = vmul.f32 %v280, %v305
      %v309 = vmul.f32 %v284, %v305
      %v310 = vmul.f32 %v288, %v305
      %v311 = vmul.f32 %v292, %v305
      %v312 = vmul.f32 %v296, %v305
      %v313 = vmul.f32 %v300, %v305
      %v314 = vadd.f32 %v262, %v306
      %v315 = vadd.f32 %v263, %v307
      %v316 = vadd.f32 %v264, %v308
      %v317 = vadd.f32 %v265, %v309
      %v318 = vadd.f32 %v266, %v310
      %v319 = vadd.f32 %v267, %v311
      %v320 = vadd.f32 %v268, %v312
      %v321 = vadd.f32 %v269, %v313
      %322 = vset.pattern.permute.xlu0 2
      %323 = vperm.xlu0 %322, %v191
      %v324 = vpop.permute.xlu0 %323
      %326 = vset.pattern.permute.xlu0 2
      %327 = vperm.xlu0 %326, %v192
      %v328 = vpop.permute.xlu0 %327
      %330 = vset.pattern.permute.xlu0 2
      %331 = vperm.xlu0 %330, %v193
      %v332 = vpop.permute.xlu0 %331
      %334 = vset.pattern.permute.xlu0 2
      %335 = vperm.xlu0 %334, %v194
      %v336 = vpop.permute.xlu0 %335
      %338 = vset.pattern.permute.xlu0 2
      %339 = vperm.xlu0 %338, %v195
      %v340 = vpop.permute.xlu0 %339
      %342 = vset.pattern.permute.xlu0 2
      %343 = vperm.xlu0 %342, %v196
      %v344 = vpop.permute.xlu0 %343
      %346 = vset.pattern.permute.xlu0 2
      %347 = vperm.xlu0 %346, %v197
      %v348 = vpop.permute.xlu0 %347
      %350 = vset.pattern.permute.xlu0 2
      %351 = vperm.xlu0 %350, %v198
      %v352 = vpop.permute.xlu0 %351
      %v354 = vadd.f32 %v314, %v324
      %v355 = vadd.f32 %v315, %v328
      %v356 = vadd.f32 %v316, %v332
      %v357 = vadd.f32 %v317, %v336
      %v358 = vadd.f32 %v318, %v340
      %v359 = vadd.f32 %v319, %v344
      %v360 = vadd.f32 %v320, %v348
      %v361 = vadd.f32 %v321, %v352
      %v362 = vtanh.pop %v354
      %v363 = vtanh.pop %v355
      %v364 = vtanh.pop %v356
      %v365 = vtanh.pop %v357
      %v366 = vtanh.pop %v358
      %v367 = vtanh.pop %v359
      %v368 = vtanh.pop %v360
      %v369 = vtanh.pop %v361
      %370 = vset.pattern.permute.xlu0 3
      %371 = vperm.xlu0 %370, %v191
      %v372 = vpop.permute.xlu0 %371
      %374 = vset.pattern.permute.xlu0 3
      %375 = vperm.xlu0 %374, %v192
      %v376 = vpop.permute.xlu0 %375
      %378 = vset.pattern.permute.xlu0 3
      %379 = vperm.xlu0 %378, %v193
      %v380 = vpop.permute.xlu0 %379
      %382 = vset.pattern.permute.xlu0 3
      %383 = vperm.xlu0 %382, %v194
      %v384 = vpop.permute.xlu0 %383
      %386 = vset.pattern.permute.xlu0 3
      %387 = vperm.xlu0 %386, %v195
      %v388 = vpop.permute.xlu0 %387
      %390 = vset.pattern.permute.xlu0 3
      %391 = vperm.xlu0 %390, %v196
      %v392 = vpop.permute.xlu0 %391
      %394 = vset.pattern.permute.xlu0 3
      %395 = vperm.xlu0 %394, %v197
      %v396 = vpop.permute.xlu0 %395
      %398 = vset.pattern.permute.xlu0 3
      %399 = vperm.xlu0 %398, %v198
      %v400 = vpop.permute.xlu0 %399
      %vm402 = vcmask 523264
      %v404 = vsel %vm402, %v200, 0
      %v407 = vsel %vm402, %v201, 0
      %v410 = vsel %vm402, %v202, 0
      %v413 = vsel %vm402, %v203, 0
      %v416 = vsel %vm402, %v204, 0
      %v419 = vsel %vm402, %v205, 0
      %v422 = vsel %vm402, %v206, 0
      %v425 = vsel %vm402, %v207, 0
      %427 = vmatprep.subr.mxu0 0.0
      %428 = vmatpush1.msra.mxu0 0.0
      %429 = vmatprep.subr.mxu0 0.0
      %430 = vmatpush1.msra.mxu0 0.0
      %431 = vmatprep.subr.mxu0 0.0
      %432 = vmatpush1.msra.mxu0 0.0
      %433 = vmatprep.subr.mxu0 0.0
      %434 = vmatpush1.msra.mxu0 0.0
      %435 = vmatprep.subr.mxu0 0.0
      %436 = vmatpush1.msra.mxu0 0.0
      %437 = vmatprep.subr.mxu0 0.0
      %438 = vmatpush1.msra.mxu0 0.0
      %439 = vmatprep.subr.mxu0 0.0
      %440 = vmatpush1.msra.mxu0 0.0
      %441 = vmatprep.subr.mxu0 0.0
      %442 = vmatpush1.msra.mxu0 0.0
      %443 = vmatprep.subr.mxu0 0.0
      %444 = vmatpush1.msra.mxu0 %v369
      %445 = vmatprep.subr.mxu0 0.0
      %446 = vmatpush1.msra.mxu0 %v368
      %447 = vmatprep.subr.mxu0 0.0
      %448 = vmatpush1.msra.mxu0 %v367
      %449 = vmatprep.subr.mxu0 0.0
      %450 = vmatpush1.msra.mxu0 %v366
      %451 = vmatprep.subr.mxu0 0.0
      %452 = vmatpush1.msra.mxu0 %v365
      %453 = vmatprep.subr.mxu0 0.0
      %454 = vmatpush1.msra.mxu0 %v364
      %455 = vmatprep.subr.mxu0 0.0
      %456 = vmatpush1.msra.mxu0 %v363
      %457 = vmatprep.subr.mxu0 0.0
      %458 = vmatpush1.msra.mxu0 %v362
      %459 = vmatprep.subr.mxu0 0.0
      %460 = vmatpush2.msra.mxu0 0.0
      %461 = vmatprep.subr.mxu0 0.0
      %462 = vmatpush2.msra.mxu0 0.0
      %463 = vmatprep.subr.mxu0 0.0
      %464 = vmatpush2.msra.mxu0 0.0
      %465 = vmatprep.subr.mxu0 0.0
      %466 = vmatpush2.msra.mxu0 0.0
      %467 = vmatprep.subr.mxu0 0.0
      %468 = vmatpush2.msra.mxu0 0.0
      %469 = vmatprep.subr.mxu0 0.0
      %470 = vmatpush2.msra.mxu0 0.0
      %471 = vmatprep.subr.mxu0 0.0
      %472 = vmatpush2.msra.mxu0 0.0
      %473 = vmatprep.subr.mxu0 0.0
      %474 = vmatpush2.msra.mxu0 0.0
      %475 = vmatprep.subr.mxu0 0.0
      %476 = vmatpush2.msra.mxu0 0.0
      %477 = vmatprep.subr.mxu0 0.0
      %478 = vmatpush2.msra.mxu0 0.0
      %479 = vmatprep.subr.mxu0 0.0
      %480 = vmatpush2.msra.mxu0 0.0
      %481 = vmatprep.subr.mxu0 0.0
      %482 = vmatpush2.msra.mxu0 0.0
      %483 = vmatprep.subr.mxu0 0.0
      %484 = vmatpush2.msra.mxu0 0.0
      %485 = vmatprep.subr.mxu0 0.0
      %486 = vmatpush2.msra.mxu0 0.0
      %487 = vmatprep.subr.mxu0 0.0
      %488 = vmatpush2.msra.mxu0 0.0
      %489 = vmatprep.subr.mxu0 0.0
      %490 = vmatpush2.msra.mxu0 0.0
      %491 = vmatprep.mubr.f32.mxu0 0.0
      %492 = vmatmul.mubr.f32.gmra.mxu0 %v404
      %v493 = vpop.f32.mrf.mxu0
      %v494 = vadd.f32 %v372, %v493
      %v495 = vpop.f32.mrf.mxu0
      %496 = vmatprep.mubr.f32.mxu0 0.0
      %497 = vmatmul.mubr.f32.gmra.mxu0 %v407
      %v498 = vpop.f32.mrf.mxu0
      %v499 = vadd.f32 %v376, %v498
      %v500 = vpop.f32.mrf.mxu0
      %501 = vmatprep.mubr.f32.mxu0 0.0
      %502 = vmatmul.mubr.f32.gmra.mxu0 %v410
      %v503 = vpop.f32.mrf.mxu0
      %v504 = vadd.f32 %v380, %v503
      %v505 = vpop.f32.mrf.mxu0
      %506 = vmatprep.mubr.f32.mxu0 0.0
      %507 = vmatmul.mubr.f32.gmra.mxu0 %v413
      %v508 = vpop.f32.mrf.mxu0
      %v509 = vadd.f32 %v384, %v508
      %v510 = vpop.f32.mrf.mxu0
      %511 = vmatprep.mubr.f32.mxu0 0.0
      %512 = vmatmul.mubr.f32.gmra.mxu0 %v416
      %v513 = vpop.f32.mrf.mxu0
      %v514 = vadd.f32 %v388, %v513
      %v515 = vpop.f32.mrf.mxu0
      %516 = vmatprep.mubr.f32.mxu0 0.0
      %517 = vmatmul.mubr.f32.gmra.mxu0 %v419
      %v518 = vpop.f32.mrf.mxu0
      %v519 = vadd.f32 %v392, %v518
      %v520 = vpop.f32.mrf.mxu0
      %521 = vmatprep.mubr.f32.mxu0 0.0
      %522 = vmatmul.mubr.f32.gmra.mxu0 %v422
      %v523 = vpop.f32.mrf.mxu0
      %v524 = vadd.f32 %v396, %v523
      %v525 = vpop.f32.mrf.mxu0
      %526 = vmatprep.mubr.f32.mxu0 0.0
      %527 = vmatmul.mubr.f32.gmra.mxu0 %v425
      %v528 = vpop.f32.mrf.mxu0
      %v529 = vadd.f32 %v400, %v528
      %v530 = vpop.f32.mrf.mxu0
      %531 = vdwg.mxu0
      %v532 = vtanh.pop %v494
      %v533 = vtanh.pop %v499
      %v534 = vtanh.pop %v504
      %v535 = vtanh.pop %v509
      %v536 = vtanh.pop %v514
      %v537 = vtanh.pop %v519
      %v538 = vtanh.pop %v524
      %v539 = vtanh.pop %v529
      %540 = vset.pattern.permute.xlu0 4
      %541 = vperm.xlu0 %540, %v191
      %v542 = vpop.permute.xlu0 %541
      %544 = vset.pattern.permute.xlu0 4
      %545 = vperm.xlu0 %544, %v192
      %v546 = vpop.permute.xlu0 %545
      %548 = vset.pattern.permute.xlu0 4
      %549 = vperm.xlu0 %548, %v193
      %v550 = vpop.permute.xlu0 %549
      %552 = vset.pattern.permute.xlu0 4
      %553 = vperm.xlu0 %552, %v194
      %v554 = vpop.permute.xlu0 %553
      %556 = vset.pattern.permute.xlu0 4
      %557 = vperm.xlu0 %556, %v195
      %v558 = vpop.permute.xlu0 %557
      %560 = vset.pattern.permute.xlu0 4
      %561 = vperm.xlu0 %560, %v196
      %v562 = vpop.permute.xlu0 %561
      %564 = vset.pattern.permute.xlu0 4
      %565 = vperm.xlu0 %564, %v197
      %v566 = vpop.permute.xlu0 %565
      %568 = vset.pattern.permute.xlu0 4
      %569 = vperm.xlu0 %568, %v198
      %v570 = vpop.permute.xlu0 %569
      %v573 = vsel %vm402, %v208, 0
      %v576 = vsel %vm402, %v209, 0
      %v579 = vsel %vm402, %v210, 0
      %v582 = vsel %vm402, %v211, 0
      %v585 = vsel %vm402, %v212, 0
      %v588 = vsel %vm402, %v213, 0
      %v591 = vsel %vm402, %v214, 0
      %v594 = vsel %vm402, %v215, 0
      %596 = vmatprep.subr.mxu0 0.0
      %597 = vmatpush1.msra.mxu0 0.0
      %598 = vmatprep.subr.mxu0 0.0
      %599 = vmatpush1.msra.mxu0 0.0
      %600 = vmatprep.subr.mxu0 0.0
      %601 = vmatpush1.msra.mxu0 0.0
      %602 = vmatprep.subr.mxu0 0.0
      %603 = vmatpush1.msra.mxu0 0.0
      %604 = vmatprep.subr.mxu0 0.0
      %605 = vmatpush1.msra.mxu0 0.0
      %606 = vmatprep.subr.mxu0 0.0
      %607 = vmatpush1.msra.mxu0 0.0
      %608 = vmatprep.subr.mxu0 0.0
      %609 = vmatpush1.msra.mxu0 0.0
      %610 = vmatprep.subr.mxu0 0.0
      %611 = vmatpush1.msra.mxu0 0.0
      %612 = vmatprep.subr.mxu0 0.0
      %613 = vmatpush1.msra.mxu0 %v539
      %614 = vmatprep.subr.mxu0 0.0
      %615 = vmatpush1.msra.mxu0 %v538
      %616 = vmatprep.subr.mxu0 0.0
      %617 = vmatpush1.msra.mxu0 %v537
      %618 = vmatprep.subr.mxu0 0.0
      %619 = vmatpush1.msra.mxu0 %v536
      %620 = vmatprep.subr.mxu0 0.0
      %621 = vmatpush1.msra.mxu0 %v535
      %622 = vmatprep.subr.mxu0 0.0
      %623 = vmatpush1.msra.mxu0 %v534
      %624 = vmatprep.subr.mxu0 0.0
      %625 = vmatpush1.msra.mxu0 %v533
      %626 = vmatprep.subr.mxu0 0.0
      %627 = vmatpush1.msra.mxu0 %v532
      %628 = vmatprep.subr.mxu0 0.0
      %629 = vmatpush2.msra.mxu0 0.0
      %630 = vmatprep.subr.mxu0 0.0
      %631 = vmatpush2.msra.mxu0 0.0
      %632 = vmatprep.subr.mxu0 0.0
      %633 = vmatpush2.msra.mxu0 0.0
      %634 = vmatprep.subr.mxu0 0.0
      %635 = vmatpush2.msra.mxu0 0.0
      %636 = vmatprep.subr.mxu0 0.0
      %637 = vmatpush2.msra.mxu0 0.0
      %638 = vmatprep.subr.mxu0 0.0
      %639 = vmatpush2.msra.mxu0 0.0
      %640 = vmatprep.subr.mxu0 0.0
      %641 = vmatpush2.msra.mxu0 0.0
      %642 = vmatprep.subr.mxu0 0.0
      %643 = vmatpush2.msra.mxu0 0.0
      %644 = vmatprep.subr.mxu0 0.0
      %645 = vmatpush2.msra.mxu0 0.0
      %646 = vmatprep.subr.mxu0 0.0
      %647 = vmatpush2.msra.mxu0 0.0
      %648 = vmatprep.subr.mxu0 0.0
      %649 = vmatpush2.msra.mxu0 0.0
      %650 = vmatprep.subr.mxu0 0.0
      %651 = vmatpush2.msra.mxu0 0.0
      %652 = vmatprep.subr.mxu0 0.0
      %653 = vmatpush2.msra.mxu0 0.0
      %654 = vmatprep.subr.mxu0 0.0
      %655 = vmatpush2.msra.mxu0 0.0
      %656 = vmatprep.subr.mxu0 0.0
      %657 = vmatpush2.msra.mxu0 0.0
      %658 = vmatprep.subr.mxu0 0.0
      %659 = vmatpush2.msra.mxu0 0.0
      %660 = vmatprep.mubr.f32.mxu0 0.0
      %661 = vmatmul.mubr.f32.gmra.mxu0 %v573
      %v662 = vpop.f32.mrf.mxu0
      %v663 = vadd.f32 %v542, %v662
      %v664 = vpop.f32.mrf.mxu0
      %665 = vmatprep.mubr.f32.mxu0 0.0
      %666 = vmatmul.mubr.f32.gmra.mxu0 %v576
      %v667 = vpop.f32.mrf.mxu0
      %v668 = vadd.f32 %v546, %v667
      %v669 = vpop.f32.mrf.mxu0
      %670 = vmatprep.mubr.f32.mxu0 0.0
      %671 = vmatmul.mubr.f32.gmra.mxu0 %v579
      %v672 = vpop.f32.mrf.mxu0
      %v673 = vadd.f32 %v550, %v672
      %v674 = vpop.f32.mrf.mxu0
      %675 = vmatprep.mubr.f32.mxu0 0.0
      %676 = vmatmul.mubr.f32.gmra.mxu0 %v582
      %v677 = vpop.f32.mrf.mxu0
      %v678 = vadd.f32 %v554, %v677
      %v679 = vpop.f32.mrf.mxu0
      %680 = vmatprep.mubr.f32.mxu0 0.0
      %681 = vmatmul.mubr.f32.gmra.mxu0 %v585
      %v682 = vpop.f32.mrf.mxu0
      %v683 = vadd.f32 %v558, %v682
      %v684 = vpop.f32.mrf.mxu0
      %685 = vmatprep.mubr.f32.mxu0 0.0
      %686 = vmatmul.mubr.f32.gmra.mxu0 %v588
      %v687 = vpop.f32.mrf.mxu0
      %v688 = vadd.f32 %v562, %v687
      %v689 = vpop.f32.mrf.mxu0
      %690 = vmatprep.mubr.f32.mxu0 0.0
      %691 = vmatmul.mubr.f32.gmra.mxu0 %v591
      %v692 = vpop.f32.mrf.mxu0
      %v693 = vadd.f32 %v566, %v692
      %v694 = vpop.f32.mrf.mxu0
      %695 = vmatprep.mubr.f32.mxu0 0.0
      %696 = vmatmul.mubr.f32.gmra.mxu0 %v594
      %v697 = vpop.f32.mrf.mxu0
      %v698 = vadd.f32 %v570, %v697
      %v699 = vpop.f32.mrf.mxu0
      %700 = vdwg.mxu0
      %v701 = vtanh.pop %v663
      %v702 = vtanh.pop %v668
      %v703 = vtanh.pop %v673
      %v704 = vtanh.pop %v678
      %v705 = vtanh.pop %v683
      %v706 = vtanh.pop %v688
      %v707 = vtanh.pop %v693
      %v708 = vtanh.pop %v698
      %709 = vset.pattern.permute.xlu0 5
      %710 = vperm.xlu0 %709, %v191
      %v711 = vpop.permute.xlu0 %710
      %713 = vset.pattern.permute.xlu0 5
      %714 = vperm.xlu0 %713, %v192
      %v715 = vpop.permute.xlu0 %714
      %717 = vset.pattern.permute.xlu0 5
      %718 = vperm.xlu0 %717, %v193
      %v719 = vpop.permute.xlu0 %718
      %721 = vset.pattern.permute.xlu0 5
      %722 = vperm.xlu0 %721, %v194
      %v723 = vpop.permute.xlu0 %722
      %725 = vset.pattern.permute.xlu0 5
      %726 = vperm.xlu0 %725, %v195
      %v727 = vpop.permute.xlu0 %726
      %729 = vset.pattern.permute.xlu0 5
      %730 = vperm.xlu0 %729, %v196
      %v731 = vpop.permute.xlu0 %730
      %733 = vset.pattern.permute.xlu0 5
      %734 = vperm.xlu0 %733, %v197
      %v735 = vpop.permute.xlu0 %734
      %737 = vset.pattern.permute.xlu0 5
      %738 = vperm.xlu0 %737, %v198
      %v739 = vpop.permute.xlu0 %738
      %v741 = vmul.f32 %v711, %v701
      %v742 = vmul.f32 %v715, %v702
      %v743 = vmul.f32 %v719, %v703
      %v744 = vmul.f32 %v723, %v704
      %v745 = vmul.f32 %v727, %v705
      %v746 = vmul.f32 %v731, %v706
      %v747 = vmul.f32 %v735, %v707
      %v748 = vmul.f32 %v739, %v708
      %v749 = vadd.f32 %v741, %v742
      %v750 = vadd.f32 %v749, %v743
      %v751 = vadd.f32 %v750, %v744
      %v752 = vadd.f32 %v751, %v745
      %v753 = vadd.f32 %v752, %v746
      %v754 = vadd.f32 %v753, %v747
      %v755 = vadd.f32 %v754, %v748
      %v756 = vrot.slane %v755, 4
      %v757 = vadd.f32 %v755, %v756
      %v758 = vrot.slane %v757, 2
      %v759 = vadd.f32 %v757, %v758
      %v760 = vrot.slane %v759, 1
      %v761 = vadd.f32 %v759, %v760
      %763 = vset.pattern.permute.xlu0 6
      %764 = vperm.xlu0 %763, %v199
      %v765 = vpop.permute.xlu0 %764
      %v767 = vadd.f32 %v761, %v765
      %768 = vst [vmem:[%s190] sm:$0x1] %v767
      %p769 = scmp.lt.s32.totalorder %s15, 1
      %s770 = scalar_select %p769, %s15, 1
      %s771 = scalar_lea.vmem %s4, %s770
      // Predicated region
      $region37: #{burgers_forward.1} parent=35 // pred_check
        %p772 = pneg %p122
      $region38: #{burgers_forward.1} parent=35 // pred_check_branch
        %774 = sbr.rel (%p772) target = $region40
      $region39: #{burgers_forward.1} parent=35 // pred_region
        _
      $region40: #{burgers_forward.1} parent=35 // pred_fallthru
        _
    $region36: #{burgers_forward.1} parent=5 // pred_fallthru
      _
    %p775 = scmp.le.s32.totalorder 2, %s10
    // Predicated region
    $region41: #{burgers_forward.1} parent=5 // pred_check
      %p776 = pneg %p775
    $region42: #{burgers_forward.1} parent=5 // pred_check_branch
      %778 = sbr.rel (%p776) target = $region44
    $region43: #{burgers_forward.1} parent=5 // pred_region
      %s779 = ssub.s32 %s10, 2
      // Predicated region
      $region45: #{burgers_forward.1} parent=43 // pred_check
        %p780 = pneg %p128
      $region46: #{burgers_forward.1} parent=43 // pred_check_branch
        %782 = sbr.rel (%p780) target = $region48
      $region47: #{burgers_forward.1} parent=43 // pred_region
        %p783 = scmp.lt.s32.totalorder %s16, 1
        %s784 = scalar_select %p783, %s16, 1
        %s785 = scalar_lea.vmem %s4, %s784
      $region48: #{burgers_forward.1} parent=43 // pred_fallthru
        _
    $region44: #{burgers_forward.1} parent=5 // pred_fallthru
      _
  $region6: #{burgers_forward.1} parent=0 // loop_footer
    %s14 = sadd.s32 1, %s10
  $region7: #{burgers_forward.1} parent=0 // loop_footer_branch
    %9 = sbr.rel target = $region3
  $region8: #{burgers_forward.1} parent=0 // loop_exit
    _

</llo_original>
